<compile_context>
chip_gen: v6e
topology: v6e:2x2x1
jax: 0.10.0
libtpu: 0.0.40
codegen_flags: <defaults>
</compile_context>

<pallas_src>
import jax
import jax.numpy as jnp
from jax.experimental import pallas as pl
from jax.experimental.pallas import tpu as pltpu

_LANES = 128
_ACC_ROWS = 64  # 8 f32 vregs of resident accumulator per core


def _reduce_kernel(x_ref, out_ref):
    """Accumulate a (tile_rows, 128) block into a resident (64, 128) f32 slab.

    Per-step work is VPU-only elementwise adds into 8 independent accumulator
    vregs; the dtype cast is fused per 64-row group (no tile-sized f32 temp).
    The output block index is constant along the inner grid axis, so out_ref
    stays VMEM-resident and is written back once per outer index.
    """
    i = pl.program_id(1)  # inner ("arbitrary") reduction axis

    @pl.when(i == 0)
    def _():
        out_ref[...] = jnp.zeros_like(out_ref)

    tile_rows = x_ref.shape[0]            # static
    n_groups = tile_rows // _ACC_ROWS     # static

    def body(j, acc):
        start = pl.multiple_of(j * _ACC_ROWS, _ACC_ROWS)
        return acc + x_ref[pl.ds(start, _ACC_ROWS), :].astype(jnp.float32)

    acc = jax.lax.fori_loop(
        0, n_groups, body,
        jnp.zeros((_ACC_ROWS, _LANES), jnp.float32),
        unroll=min(8, n_groups))

    out_ref[...] += acc


def _default_block_bytes() -> int:
    """Generation-aware input block size (per the perf review)."""
    try:
        kind = jax.devices()[0].device_kind.lower()
    except Exception:
        return 4 * 1024 * 1024
    if "v7" in kind:
        return 8 * 1024 * 1024   # 3.2 TB/s HBM: bigger blocks amortize per-step cost
    return 4 * 1024 * 1024       # v6e sweet spot; also safe for v5e's 16 MiB scoped VMEM


def pallas_reduce_sum(x: jnp.ndarray,
                      *,
                      target_block_bytes: int | None = None,
                      num_parallel: int = 2) -> jnp.ndarray:
    """Sum-reduce an arbitrary-shape array to an f32 scalar with a Pallas kernel."""
    x_flat = jnp.ravel(x)
    n = x_flat.shape[0]
    if n == 0:
        return jnp.float32(0.0)

    block_bytes = target_block_bytes or _default_block_bytes()
    itemsize = jnp.dtype(x_flat.dtype).itemsize

    tile_rows = (block_bytes // (_LANES * itemsize)) // _ACC_ROWS * _ACC_ROWS
    tile_rows = int(max(_ACC_ROWS, tile_rows))
    tile_elems = tile_rows * _LANES

    rows = n // _LANES                  # full 128-lane rows available
    lane_rem = n - rows * _LANES        # < 128 trailing elements
    steps_total = rows // tile_rows     # full tiles only (no masking needed)

    if steps_total == 0:
        # Smaller than one tile: XLA's fused reduce wins.
        return jnp.sum(x_flat.astype(jnp.float32))

    # Split across two cores only when the step count divides evenly and each
    # core gets at least 2 inner steps (keeps the grid exact -> no OOB blocks).
    ncores = num_parallel if (steps_total % num_parallel == 0
                              and steps_total >= 2 * num_parallel) else 1
    steps_per_core = steps_total // ncores
    main_rows = steps_total * tile_rows
    n_main = main_rows * _LANES

    if lane_rem == 0:
        # Free bitcast; the grid simply doesn't visit the trailing partial tile.
        x2 = x_flat.reshape(rows, _LANES)
    else:
        # Unaligned-to-128: one prefix-slice copy of the tile-aligned part.
        x2 = x_flat[:n_main].reshape(main_rows, _LANES)

    partials = pl.pallas_call(
        _reduce_kernel,
        out_shape=jax.ShapeDtypeStruct((ncores * _ACC_ROWS, _LANES), jnp.float32),
        grid_spec=pltpu.PrefetchScalarGridSpec(
            num_scalar_prefetch=0,
            grid=(ncores, steps_per_core),
            in_specs=[pl.BlockSpec(
                (tile_rows, _LANES),
                lambda c, i: (c * steps_per_core + i, 0))],
            # lane-dense (64,128) f32 slab per core; resident across inner axis
            out_specs=pl.BlockSpec((_ACC_ROWS, _LANES), lambda c, i: (c, 0)),
        ),
        compiler_params=pltpu.CompilerParams(
            dimension_semantics=("parallel", "arbitrary"),
        ),
    )(x2)

    # Single cheap cross-lane reduce of the (ncores*64, 128) partials in XLA.
    total = jnp.sum(partials)

    if n_main < n:
        # Remainder (< one tile + 127 elems): tiny suffix slice, tiny jnp.sum.
        total = total + jnp.sum(x_flat[n_main:].astype(jnp.float32))
    return total


def reduce_sum(x: jnp.ndarray, *, min_pallas_elems: int = 1 << 19) -> jnp.ndarray:
    """Dispatcher: small tensors use plain jnp.sum (launch overhead dominates)."""
    if x.size < min_pallas_elems:
        return jnp.sum(x.astype(jnp.float32))
    return pallas_reduce_sum(x)


class BaseEncoderPallas:
    """JAX/Pallas analogue of graphormer.base.BaseEncoder.

    forward() is abstract in the reference module, so it raises here too.
    The Pallas reduction above is exposed as a shared utility for concrete
    subclasses (typical encoder/criterion epilogue).
    """

    def __init__(self):
        pass  # BaseEncoder.__init__ registers no parameters.

    def forward(self, *args, **kwargs):
        raise NotImplementedError

    def __call__(self, *args, **kwargs):
        return self.forward(*args, **kwargs)

    def max_positions(self) -> float:
        """Maximum length supported by the encoder."""
        return 1000000.0

    @staticmethod
    def reduce_loss(per_element_loss: jnp.ndarray, reduce: bool = True):
        if not reduce:
            return per_element_loss
        return reduce_sum(per_element_loss)


if __name__ == "__main__":
    key = jax.random.PRNGKey(0)
    k1, k2, k3, k4 = jax.random.split(key, 4)

    enc = BaseEncoderPallas()
    assert enc.max_positions() == 1000000.0
    try:
        enc()  # abstract forward, like the reference module
        raise AssertionError("forward should be abstract")
    except NotImplementedError:
        pass

    # Force tiny blocks in the tests so the real kernel path runs at small shapes.
    tiny_blk_f32 = _ACC_ROWS * _LANES * 4   # one (64,128) f32 tile
    tiny_blk_bf16 = _ACC_ROWS * _LANES * 2  # one (64,128) bf16 tile

    # 1) small f32 tensor below one tile -> in-wrapper jnp.sum fallback path
    x1 = jax.random.normal(k1, (2, 4, 16, 16), dtype=jnp.float32)
    out1 = jax.block_until_ready(pallas_reduce_sum(x1, target_block_bytes=tiny_blk_f32))
    ref1 = jnp.sum(x1)
    assert jnp.allclose(out1, ref1, rtol=1e-5, atol=1e-4), (out1, ref1)

    # 2) bf16 tensor, multiple of the tile -> grid (2, 2), f32 accumulate in-kernel
    x2 = jax.random.normal(k2, (2, 128, 128), dtype=jnp.float32).astype(jnp.bfloat16)
    out2 = jax.block_until_ready(pallas_reduce_sum(x2, target_block_bytes=tiny_blk_bf16))
    ref2 = jnp.sum(x2.astype(jnp.float32))
    assert jnp.allclose(out2, ref2, rtol=1e-3, atol=1e-2), (out2, ref2)

    # 3) f32 tensor NOT a multiple of 128 -> prefix kernel + jnp.sum tail
    x3 = jax.random.normal(k3, (300, 130), dtype=jnp.float32)
    out3 = jax.block_until_ready(pallas_reduce_sum(x3, target_block_bytes=tiny_blk_f32))
    ref3 = jnp.sum(x3)
    assert jnp.allclose(out3, ref3, rtol=1e-5, atol=3e-3), (out3, ref3)

    # 4) multiple of 128 but not of the tile -> free-bitcast reshape, grid covers
    #    only the aligned prefix, small suffix jnp.sum tail
    x4 = jax.random.normal(k4, (72, 128), dtype=jnp.float32)
    out4 = jax.block_until_ready(pallas_reduce_sum(x4, target_block_bytes=tiny_blk_f32))
    ref4 = jnp.sum(x4)
    assert jnp.allclose(out4, ref4, rtol=1e-5, atol=3e-3), (out4, ref4)

    # dispatcher sanity (tiny input takes the plain-JAX fallback path)
    loss = jax.block_until_ready(BaseEncoderPallas.reduce_loss(x1, reduce=True))
    assert jnp.allclose(loss, ref1, rtol=1e-5, atol=1e-4), (loss, ref1)

    print("KERNEL_OK")
</pallas_src>

<mosaic_0001>
module attributes {stable_mosaic.version = 11 : i64} {
  func.func @_reduce_kernel(%arg0: i32, %arg1: i32, %arg2: memref<64x128xbf16, #tpu.memory_space<vmem>>, %arg3: memref<64x128xf32, #tpu.memory_space<vmem>>) attributes {dimension_semantics = [#tpu.dimension_semantics<parallel>, #tpu.dimension_semantics<arbitrary>], iteration_bounds = array<i64: 2, 2>, scalar_prefetch = 0 : i64, scratch_operands = 0 : i64, tpu.core_type = #tpu.core_type<tc>, window_params = [{transform_indices = @transform_0, window_bounds = array<i64: 64, 128>}, {transform_indices = @transform_1, window_bounds = array<i64: 64, 128>}]} {
    %c0_i32 = arith.constant 0 : i32
    %0 = arith.cmpi eq, %arg1, %c0_i32 : i32
    %1 = arith.extui %0 : i1 to i32
    %c0_i32_0 = arith.constant 0 : i32
    %2 = arith.cmpi ne, %1, %c0_i32_0 : i32
    scf.if %2 {
      %cst_6 = arith.constant 0.000000e+00 : f32
      %13 = vector.broadcast %cst_6 : f32 to vector<64x128xf32>
      %c0_7 = arith.constant 0 : index
      %c0_8 = arith.constant 0 : index
      %14 = vector.load %arg3[%c0_7, %c0_8] : memref<64x128xf32, #tpu.memory_space<vmem>>, vector<64x128xf32>
      tpu.vector_store %arg3[%c0_7, %c0_8], %13 {strides = array<i32>} : memref<64x128xf32, #tpu.memory_space<vmem>>, vector<64x128xf32>,
    } else {
    }
    %cst = arith.constant 0.000000e+00 : f32
    %3 = vector.broadcast %cst : f32 to vector<64x128xf32>
    %c0_i32_1 = arith.constant 0 : i32
    %c64_i32 = arith.constant 64 : i32
    %4 = arith.muli %c0_i32_1, %c64_i32 : i32
    %5 = tpu.assume_multiple %4, 64 : i32
    %6 = arith.index_cast %5 : i32 to index
    %c0 = arith.constant 0 : index
    %7 = vector.load %arg2[%6, %c0] : memref<64x128xbf16, #tpu.memory_space<vmem>>, vector<64x128xbf16>
    %8 = arith.extf %7 : vector<64x128xbf16> to vector<64x128xf32>
    %9 = arith.addf %3, %8 : vector<64x128xf32>
    %c1_i32 = arith.constant 1 : i32
    %c0_2 = arith.constant 0 : index
    %c0_3 = arith.constant 0 : index
    %10 = vector.load %arg3[%c0_2, %c0_3] : memref<64x128xf32, #tpu.memory_space<vmem>>, vector<64x128xf32>
    %11 = arith.addf %10, %9 : vector<64x128xf32>
    %c0_4 = arith.constant 0 : index
    %c0_5 = arith.constant 0 : index
    %12 = vector.load %arg3[%c0_4, %c0_5] : memref<64x128xf32, #tpu.memory_space<vmem>>, vector<64x128xf32>
    tpu.vector_store %arg3[%c0_4, %c0_5], %11 {strides = array<i32>} : memref<64x128xf32, #tpu.memory_space<vmem>>, vector<64x128xf32>,
    return
  }
  func.func @transform_0(%arg0: i32, %arg1: i32) -> (i32, i32) {
    %c2_i32 = arith.constant 2 : i32
    %0 = arith.muli %arg0, %c2_i32 : i32
    %1 = arith.addi %0, %arg1 : i32
    %c0_i32 = arith.constant 0 : i32
    %c0_i32_0 = arith.constant 0 : i32
    return %1, %c0_i32 : i32, i32
  }
  func.func @transform_1(%arg0: i32, %arg1: i32) -> (i32, i32) {
    %c0_i32 = arith.constant 0 : i32
    %c0_i32_0 = arith.constant 0 : i32
    return %arg0, %c0_i32 : i32, i32
  }
}

</mosaic_0001>

<llo_original>
// kernel: tpu_custom_call.1
$region0: #{tpu_custom_call.1}
  #allocation0 [shape = 'u32[]', space=smem, size = 0x4, offset = 0x4, fixed_abs, tag = 'smem constant byte address 0x4 - core index']
  #allocation1 [shape = 'u32[144,128]{1,0:T(1,128)}', space=vmem, size = 0x12000, scoped, tag = 'internal scratch']
  %s0 = inlined_call_operand.hbm [shape: bf16[256,128], index: 0, kind: input, shape index: {}]
  %s1 = inlined_call_operand.hbm [shape: f32[128,128], index: 1, kind: output, shape index: {}]
  %s2 = sld [smem:[#allocation0]]
  $region45: #{tpu_custom_call.1} parent=0
    _
  %s4 = ssub.s32 1, %s2
  %s5 = scalar_select 0, %s4, %s2
  $region1: #{tpu_custom_call.1} parent=0
    #allocation2 [shape = 'u8[32768]{0}', space=vmem, size = 0x8000, scoped, tag = 'input window, operand 0']
    #allocation3 [shape = 's32[2]{0}', space=sflag, size = 0x8, scoped, tag = 'scoped memory for tpu_custom_call.1']
    #allocation4 [shape = 's32[2]{0}', space=sflag, size = 0x8, scoped, tag = 'scoped memory for tpu_custom_call.1']
    #allocation5 [shape = 'u8[65536]{0}', space=vmem, size = 0x10000, scoped, tag = 'output window, operand 0']
    %6 = vsyncpa [#allocation3], 0
    %s7 = scalar_lea.sflag [#allocation3], 1
    %8 = vsyncpa %s7, 0
    %9 = vsyncpa [#allocation4], 0
    %s10 = scalar_lea.sflag [#allocation4], 1
    %11 = vsyncpa %s10, 0
    loop: start=0, step=1, limit=6
    $region2: #{tpu_custom_call.1} parent=1 // loop_pre_header
      _
    $region3: #{tpu_custom_call.1} parent=1 // loop_header
      %s13 = sphi 0, %s17
      %p14 = scmp.ge.s32.totalorder %s13, 6
      %s20 = sphi 0, %s32
      %s21 = sphi 0, %s28
      %s22 = sphi 0, %s20
      %s23 = sphi 0, %s21
      %s24 = sphi 0, %s22
      %s25 = sphi 0, %s23
      %s39 = sphi 0, %s41
      %s42 = sphi 0, %s39
      %s43 = sphi 0, %s42
      %s59 = sphi 0, %s43
      %s65 = sphi 0, %s67
      %s68 = sphi 0, %s65
      %s69 = sphi 0, %s68
      %s85 = sphi 0, %s69
    $region4: #{tpu_custom_call.1} parent=1 // loop_header_branch
      %16 = sbr.rel (%p14) target = $region8
    $region5: #{tpu_custom_call.1} parent=1 // loop_body
      %s18 = ssub.s32 %s13, 1
      %s19 = ssub.s32 %s13, 2
      %s26 = sadd.s32 1, %s21
      %p27 = scmp.ge.s32.totalorder %s26, 2
      %s28 = scalar_select %p27, 0, %s26
      %s29 = sadd.s32 1, %s20
      %s30 = scalar_select %p27, %s29, %s20
      %p31 = scmp.ge.s32.totalorder %s30, 2
      %s32 = scalar_select %p31, 0, %s30
      %s33 = smul.u32 %s20, 2
      %s34 = sadd.s32 %s33, %s21
      %s35 = smul.u32 %s32, 2
      %s36 = sadd.s32 %s35, %s28
      %s37 = ssub.s32 %s34, %s36
      %p38 = scmp.eq.s32.totalorder %s37, 0
      %s40 = sadd.s32 %s39, 1
      %s41 = scalar_select %p38, %s39, %s40
      %p44 = pneg %p38
      %p45 = scmp.eq.s32.totalorder %s13, 3
      %p46 = por %p44, %p45
      %p47 = scmp.ne.s32.totalorder %s39, %s42
      %p48 = scmp.eq.s32.totalorder %s13, 0
      %p49 = por %p47, %p48
      %p50 = scmp.ne.s32.totalorder %s39, %s42
      %p51 = scmp.eq.s32.totalorder %s18, 3
      %p52 = por %p50, %p51
      %p53 = scmp.ne.s32.totalorder %s42, %s43
      %p54 = scmp.eq.s32.totalorder %s18, 0
      %p55 = por %p53, %p54
      %p56 = scmp.ne.s32.totalorder %s42, %s43
      %p57 = scmp.eq.s32.totalorder %s19, 3
      %p58 = por %p56, %p57
      %p60 = scmp.ne.s32.totalorder %s43, %s59
      %p61 = scmp.eq.s32.totalorder %s19, 0
      %p62 = por %p60, %p61
      %s63 = ssub.s32 %s20, %s32
      %p64 = scmp.eq.s32.totalorder %s63, 0
      %s66 = sadd.s32 %s65, 1
      %s67 = scalar_select %p64, %s65, %s66
      %p70 = pneg %p64
      %p71 = scmp.eq.s32.totalorder %s13, 3
      %p72 = por %p70, %p71
      %p73 = scmp.ne.s32.totalorder %s65, %s68
      %p74 = scmp.eq.s32.totalorder %s13, 0
      %p75 = por %p73, %p74
      %p76 = scmp.ne.s32.totalorder %s65, %s68
      %p77 = scmp.eq.s32.totalorder %s18, 3
      %p78 = por %p76, %p77
      %p79 = scmp.ne.s32.totalorder %s68, %s69
      %p80 = scmp.eq.s32.totalorder %s18, 0
      %p81 = por %p79, %p80
      %p82 = scmp.ne.s32.totalorder %s68, %s69
      %p83 = scmp.eq.s32.totalorder %s19, 3
      %p84 = por %p82, %p83
      %p86 = scmp.ne.s32.totalorder %s69, %s85
      %p87 = scmp.eq.s32.totalorder %s19, 0
      %p88 = por %p86, %p87
      %p89 = scmp.le.s32.totalorder 1, %s13
      %p90 = scmp.lt.s32.totalorder %s13, 5
      %p91 = pnand %p89, %p90
      %p92 = pneg %p91
      // Predicated region
      $region9: #{tpu_custom_call.1} parent=5 // pred_check
        _
      $region10: #{tpu_custom_call.1} parent=5 // pred_check_branch
        %94 = sbr.rel (%p91) target = $region12
      $region11: #{tpu_custom_call.1} parent=5 // pred_region
        %s95 = ssub.s32 %s13, 1
      $region12: #{tpu_custom_call.1} parent=5 // pred_fallthru
        _
      %p96 = scmp.lt.s32.totalorder %s13, 4
      // Predicated region
      $region13: #{tpu_custom_call.1} parent=5 // pred_check
        %p97 = pneg %p96
      $region14: #{tpu_custom_call.1} parent=5 // pred_check_branch
        %99 = sbr.rel (%p97) target = $region16
      $region15: #{tpu_custom_call.1} parent=5 // pred_region
        // Predicated region
        $region17: #{tpu_custom_call.1} parent=15 // pred_check
          %p100 = pneg %p49
        $region18: #{tpu_custom_call.1} parent=15 // pred_check_branch
          %102 = sbr.rel (%p100) target = $region20
        $region19: #{tpu_custom_call.1} parent=15 // pred_region
          %s103 = sand.u32 %s39, 1
          %s104 = scalar_lea.sflag [#allocation3], %s103
          %s105 = sand.u32 %s39, 1
          %s106 = smul.addr %s105, 32
          %s107 = scalar_lea.vmem [#allocation2], %s106
          %s108 = smul.u32 %s20, 2
          %s109 = sadd.s32 %s108, %s21
          %s110 = smul.u32 8, %s109
          %s112 = ssub.s32 512, 512
          %113 = vsyncadd %s104, %s112
          %s114 = smul.addr %s110, 64
          %s115 = scalar_lea.hbm %s0, %s114
          %s116 = sshll.u32 %s107, 4
          %s117 = int_to_ptr.vmem [resolvable:$true] %s116
          %122 = dma.hbm_to_vmem [thread:$0]  %s115, 512, %s117, %s104, 64, 64, 4
        $region20: #{tpu_custom_call.1} parent=15 // pred_fallthru
          _
      $region16: #{tpu_custom_call.1} parent=5 // pred_fallthru
        _
      %p123 = scmp.le.s32.totalorder 1, %s13
      %p124 = scmp.lt.s32.totalorder %s13, 5
      %p125 = pnand %p123, %p124
      %p126 = pneg %p125
      // Predicated region
      $region21: #{tpu_custom_call.1} parent=5 // pred_check
        _
      $region22: #{tpu_custom_call.1} parent=5 // pred_check_branch
        %128 = sbr.rel (%p125) target = $region24
      $region23: #{tpu_custom_call.1} parent=5 // pred_region
        %s129 = ssub.s32 %s13, 1
        %s130 = sand.u32 %s42, 1
        %s131 = scalar_lea.sflag [#allocation3], %s130
        %s132 = sand.u32 %s42, 1
        %s133 = smul.addr %s132, 32
        %s134 = scalar_lea.vmem [#allocation2], %s133
        // Predicated region
        $region25: #{tpu_custom_call.1} parent=23 // pred_check
          %p135 = pneg %p55
        $region26: #{tpu_custom_call.1} parent=23 // pred_check_branch
          %137 = sbr.rel (%p135) target = $region28
        $region27: #{tpu_custom_call.1} parent=23 // pred_region
          %138 = dma.done %s131, 512
        $region28: #{tpu_custom_call.1} parent=23 // pred_fallthru
          _
        %s139 = sand.u32 %s42, 1
        %s140 = scalar_lea.sflag [#allocation3], %s139
        %s141 = sand.u32 %s42, 1
        %s142 = smul.addr %s141, 32
        %s143 = scalar_lea.vmem [#allocation2], %s142
        %p144 = pneg %p55
        %p145 = pneg %p52
        %p146 = pneg %p81
        %p147 = pneg %p78
        %s148 = sand.u32 %s68, 1
        %s149 = scalar_lea.sflag [#allocation4], %s148
        %s150 = sand.u32 %s68, 1
        %s151 = smul.addr %s150, 64
        %s152 = scalar_lea.vmem [#allocation5], %s151
        %s153 = smul.u32 %s22, 2
        %s154 = sadd.s32 %s153, %s23
        %s155 = smul.u32 8, %s154
        %s156 = smul.u32 8, %s22
        %p157 = scmp.eq.s32.totalorder %s23, 0
        // Predicated region
        $region29: #{tpu_custom_call.1} parent=23 // pred_check
          %p158 = pneg %p157
        $region30: #{tpu_custom_call.1} parent=23 // pred_check_branch
          %160 = sbr.rel (%p158) target = $region32
        $region31: #{tpu_custom_call.1} parent=23 // pred_region
          %161 = vst [vmem:[%s152] sm:$0xff] 0.0
          %162 = vst [vmem:[%s152 + $0x8] sm:$0xff] 0.0
          %163 = vst [vmem:[%s152 + $0x10] sm:$0xff] 0.0
          %164 = vst [vmem:[%s152 + $0x18] sm:$0xff] 0.0
          %165 = vst [vmem:[%s152 + $0x20] sm:$0xff] 0.0
          %166 = vst [vmem:[%s152 + $0x28] sm:$0xff] 0.0
          %167 = vst [vmem:[%s152 + $0x30] sm:$0xff] 0.0
          %168 = vst [vmem:[%s152 + $0x38] sm:$0xff] 0.0
        $region32: #{tpu_custom_call.1} parent=23 // pred_fallthru
          _
        %v169 = vld [vmem:[%s134] sm:$0xf]
        %v170 = vld [vmem:[%s134 + $0x4] sm:$0xf]
        %v171 = vld [vmem:[%s134 + $0x8] sm:$0xf]
        %v172 = vld [vmem:[%s134 + $0xc] sm:$0xf]
        %v173 = vld [vmem:[%s134 + $0x10] sm:$0xf]
        %v174 = vld [vmem:[%s134 + $0x14] sm:$0xf]
        %v175 = vld [vmem:[%s134 + $0x18] sm:$0xf]
        %v176 = vld [vmem:[%s134 + $0x1c] sm:$0xf]
        %v177 = vunpack.c.l.bf16 %v169
        %v178 = vunpack.c.l.bf16 %v170
        %v179 = vunpack.c.l.bf16 %v171
        %v180 = vunpack.c.l.bf16 %v172
        %v181 = vunpack.c.l.bf16 %v173
        %v182 = vunpack.c.l.bf16 %v174
        %v183 = vunpack.c.l.bf16 %v175
        %v184 = vunpack.c.l.bf16 %v176
        %v185 = vadd.f32 %v177, 0.0
        %v186 = vadd.f32 %v178, 0.0
        %v187 = vadd.f32 %v179, 0.0
        %v188 = vadd.f32 %v180, 0.0
        %v189 = vadd.f32 %v181, 0.0
        %v190 = vadd.f32 %v182, 0.0
        %v191 = vadd.f32 %v183, 0.0
        %v192 = vadd.f32 %v184, 0.0
        %v193 = vld [vmem:[%s152] sm:$0xff]
        %v194 = vld [vmem:[%s152 + $0x8] sm:$0xff]
        %v195 = vld [vmem:[%s152 + $0x10] sm:$0xff]
        %v196 = vld [vmem:[%s152 + $0x18] sm:$0xff]
        %v197 = vld [vmem:[%s152 + $0x20] sm:$0xff]
        %v198 = vld [vmem:[%s152 + $0x28] sm:$0xff]
        %v199 = vld [vmem:[%s152 + $0x30] sm:$0xff]
        %v200 = vld [vmem:[%s152 + $0x38] sm:$0xff]
        %v201 = vadd.f32 %v193, %v185
        %v202 = vadd.f32 %v194, %v186
        %v203 = vadd.f32 %v195, %v187
        %v204 = vadd.f32 %v196, %v188
        %v205 = vadd.f32 %v197, %v189
        %v206 = vadd.f32 %v198, %v190
        %v207 = vadd.f32 %v199, %v191
        %v208 = vadd.f32 %v200, %v192
        %209 = vst [vmem:[%s152] sm:$0xff] %v201
        %210 = vst [vmem:[%s152 + $0x8] sm:$0xff] %v202
        %211 = vst [vmem:[%s152 + $0x10] sm:$0xff] %v203
        %212 = vst [vmem:[%s152 + $0x18] sm:$0xff] %v204
        %213 = vst [vmem:[%s152 + $0x20] sm:$0xff] %v205
        %214 = vst [vmem:[%s152 + $0x28] sm:$0xff] %v206
        %215 = vst [vmem:[%s152 + $0x30] sm:$0xff] %v207
        %216 = vst [vmem:[%s152 + $0x38] sm:$0xff] %v208
        %s217 = sand.u32 %s68, 1
        %s218 = scalar_lea.sflag [#allocation4], %s217
        %s219 = sand.u32 %s68, 1
        %s220 = smul.addr %s219, 64
        %s221 = scalar_lea.vmem [#allocation5], %s220
        // Predicated region
        $region33: #{tpu_custom_call.1} parent=23 // pred_check
          %p222 = pneg %p78
        $region34: #{tpu_custom_call.1} parent=23 // pred_check_branch
          %224 = sbr.rel (%p222) target = $region36
        $region35: #{tpu_custom_call.1} parent=23 // pred_region
          %s225 = smul.u32 8, %s22
          %s227 = ssub.s32 1024, 1024
          %228 = vsyncadd %s218, %s227
          %s229 = smul.addr %s225, 128
          %s230 = scalar_lea.hbm %s1, %s229
          %s231 = sshll.u32 %s221, 4
          %s232 = int_to_ptr.vmem [resolvable:$true] %s231
          %237 = dma.vmem_to_hbm [thread:$0]  %s232, 1024, %s230, %s218, 128, 128, 8
        $region36: #{tpu_custom_call.1} parent=23 // pred_fallthru
          _
      $region24: #{tpu_custom_call.1} parent=5 // pred_fallthru
        _
      %p238 = scmp.le.s32.totalorder 2, %s13
      // Predicated region
      $region37: #{tpu_custom_call.1} parent=5 // pred_check
        %p239 = pneg %p238
      $region38: #{tpu_custom_call.1} parent=5 // pred_check_branch
        %241 = sbr.rel (%p239) target = $region40
      $region39: #{tpu_custom_call.1} parent=5 // pred_region
        %s242 = ssub.s32 %s13, 2
        // Predicated region
        $region41: #{tpu_custom_call.1} parent=39 // pred_check
          %p243 = pneg %p84
        $region42: #{tpu_custom_call.1} parent=39 // pred_check_branch
          %245 = sbr.rel (%p243) target = $region44
        $region43: #{tpu_custom_call.1} parent=39 // pred_region
          %s246 = sand.u32 %s69, 1
          %s247 = scalar_lea.sflag [#allocation4], %s246
          %s248 = sand.u32 %s69, 1
          %s249 = smul.addr %s248, 64
          %s250 = scalar_lea.vmem [#allocation5], %s249
          %251 = dma.done %s247, 1024
        $region44: #{tpu_custom_call.1} parent=39 // pred_fallthru
          _
      $region40: #{tpu_custom_call.1} parent=5 // pred_fallthru
        _
    $region6: #{tpu_custom_call.1} parent=1 // loop_footer
      %s17 = sadd.s32 1, %s13
    $region7: #{tpu_custom_call.1} parent=1 // loop_footer_branch
      %12 = sbr.rel target = $region3
    $region8: #{tpu_custom_call.1} parent=1 // loop_exit
      _
    %252 = vsyncpa [#allocation3], 1
    %s253 = scalar_lea.sflag [#allocation3], 1
    %254 = vsyncpa %s253, 1
    %255 = vsyncpa [#allocation4], 1
    %s256 = scalar_lea.sflag [#allocation4], 1
    %257 = vsyncpa %s256, 1

</llo_original>
